<compile_context>
chip_gen: v7x
topology: tpu7x:2x2x1
jax: 0.10.0
libtpu: 0.0.40
codegen_flags: <defaults>
</compile_context>

<pallas_src>
import numpy as np
import jax
import jax.numpy as jnp
from jax.experimental import pallas as pl
from jax.experimental.pallas import tpu as pltpu

# ---------------- module config (deterministic, in-script) ----------------
SAMPLE_RATE = 16000
N_FFT = 256
N_MELS = 32
HOP = 64
F_MIN = 20.0
F_MAX = SAMPLE_RATE / 2.0
EPS = 1e-5

N_FREQS = N_FFT // 2 + 1          # 129
NF_PAD = 136                      # 129 padded to an 8-aligned row count


# ---------------- slaney mel filterbank (matches torchaudio slaney/slaney) ----------------
def _hz_to_mel_slaney(f):
    f = np.asarray(f, dtype=np.float64)
    f_sp = 200.0 / 3.0
    min_log_hz = 1000.0
    min_log_mel = min_log_hz / f_sp
    logstep = np.log(6.4) / 27.0
    lin = f / f_sp
    log_part = min_log_mel + np.log(np.maximum(f, 1e-10) / min_log_hz) / logstep
    return np.where(f >= min_log_hz, log_part, lin)


def _mel_to_hz_slaney(m):
    m = np.asarray(m, dtype=np.float64)
    f_sp = 200.0 / 3.0
    min_log_hz = 1000.0
    min_log_mel = min_log_hz / f_sp
    logstep = np.log(6.4) / 27.0
    lin = f_sp * m
    log_part = min_log_hz * np.exp(logstep * (m - min_log_mel))
    return np.where(m >= min_log_mel, log_part, lin)


def _mel_fbank(n_freqs, f_min, f_max, n_mels, sample_rate):
    all_freqs = np.linspace(0.0, sample_rate / 2.0, n_freqs)
    m_min = _hz_to_mel_slaney(f_min)
    m_max = _hz_to_mel_slaney(f_max)
    m_pts = np.linspace(m_min, m_max, n_mels + 2)
    f_pts = _mel_to_hz_slaney(m_pts)
    f_diff = f_pts[1:] - f_pts[:-1]                       # (n_mels+1,)
    slopes = f_pts[None, :] - all_freqs[:, None]          # (n_freqs, n_mels+2)
    down_slopes = -slopes[:, :-2] / f_diff[:-1]
    up_slopes = slopes[:, 2:] / f_diff[1:]
    fb = np.maximum(0.0, np.minimum(down_slopes, up_slopes))
    enorm = 2.0 / (f_pts[2: n_mels + 2] - f_pts[:n_mels])  # slaney norm
    fb = fb * enorm[None, :]
    return fb.astype(np.float32)                          # (n_freqs, n_mels)


def _build_constants():
    n = np.arange(N_FFT, dtype=np.float64)[:, None]
    k = np.arange(N_FREQS, dtype=np.float64)[None, :]
    window = 0.5 - 0.5 * np.cos(2.0 * np.pi * np.arange(N_FFT, dtype=np.float64) / N_FFT)
    ang = 2.0 * np.pi * n * k / N_FFT
    cos_t = (window[:, None] * np.cos(ang)).T             # (N_FREQS, N_FFT)
    sin_t = (-window[:, None] * np.sin(ang)).T            # (N_FREQS, N_FFT)
    cos_t = np.pad(cos_t, ((0, NF_PAD - N_FREQS), (0, 0)))
    sin_t = np.pad(sin_t, ((0, NF_PAD - N_FREQS), (0, 0)))
    w = np.concatenate([cos_t, sin_t], axis=0).astype(np.float32)        # (2*NF_PAD, N_FFT)
    fb = _mel_fbank(N_FREQS, F_MIN, F_MAX, N_MELS, SAMPLE_RATE)          # (N_FREQS, N_MELS)
    fb_t = np.pad(fb.T, ((0, 0), (0, NF_PAD - N_FREQS))).astype(np.float32)  # (N_MELS, NF_PAD)
    return w, fb_t


# ---------------- Pallas kernel ----------------
def logmel_kernel(frames_ref, w_ref, fb_ref, out_ref):
    f = frames_ref[...]                                               # (N_FFT, TILE_F) bf16
    # fused cos/sin windowed DFT; f32 accumulation on the MXU
    ri = jnp.dot(w_ref[...], f, preferred_element_type=jnp.float32)   # (2*NF_PAD, TILE_F) f32
    re = ri[:NF_PAD, :]                                               # sublane split at 136 (8-aligned)
    im = ri[NF_PAD:, :]
    mag = jnp.sqrt(re * re + im * im)                                 # (NF_PAD, TILE_F)  power=1
    mel = jnp.dot(fb_ref[...], mag.astype(jnp.bfloat16),
                  preferred_element_type=jnp.float32)                 # (N_MELS, TILE_F)
    out_ref[...] = jnp.log(jnp.maximum(mel, EPS))


# ---------------- wrapper ----------------
def _round_up(x, m):
    return ((x + m - 1) // m) * m


def _pick_tile(total):
    # lane-dense tiles; prefer big tiles (per-grid-step overhead ~0.35us dwarfs
    # per-tile MXU work) while keeping >= 2 tiles for megacore / v7x's 2 TCs.
    if total >= 4096:
        return 1024
    if total >= 1024:
        return 512
    if total >= 512:
        return 256
    return 128


def log_melspec(x):
    """x: (B, T) float32 -> (B, n_mels, n_frames) float32 (matches torch output)."""
    B, T = x.shape
    x = x.astype(jnp.float32)

    pad = N_FFT // 2
    if T <= pad:
        raise ValueError(f"reflect padding requires T > {pad}, got T={T}")

    # center=True, pad_mode='reflect' framing built from contiguous HOP-blocks
    # (HOP divides N_FFT): ONE transpose, then 4 shifted lane-slices concatenated.
    x_pad = jnp.pad(x, ((0, 0), (pad, pad)), mode="reflect")          # (B, T + N_FFT)
    n_frames = 1 + T // HOP
    n_blocks = N_FFT // HOP                                           # 4
    need = (n_frames + n_blocks - 1) * HOP
    x_blocks = x_pad[:, :need].reshape(B, n_frames + n_blocks - 1, HOP)
    xbt = jnp.transpose(x_blocks, (2, 0, 1)).astype(jnp.bfloat16)     # (HOP, B, n_frames+3)

    # flatten (B, n_frames) onto a single lane axis -> every tile stays full
    total = B * n_frames
    frames_flat = jnp.concatenate(
        [xbt[:, :, j:j + n_frames].reshape(HOP, total) for j in range(n_blocks)],
        axis=0,
    )                                                                 # (N_FFT, B*n_frames) bf16
    # TODO(synk): framing could be folded into the kernel (pl.ANY + manual DMA of
    # one contiguous audio chunk per tile) to drop the remaining frame-matrix HBM traffic.

    tile_f = _pick_tile(total)
    total_pad = _round_up(total, tile_f)
    frames_flat = jnp.pad(frames_flat, ((0, 0), (0, total_pad - total)))

    w_np, fb_np = _build_constants()
    w = jnp.asarray(w_np, dtype=jnp.bfloat16)                         # (2*NF_PAD, N_FFT)
    fb_t = jnp.asarray(fb_np, dtype=jnp.bfloat16)                     # (N_MELS, NF_PAD)

    grid = (total_pad // tile_f,)
    out = pl.pallas_call(
        logmel_kernel,
        out_shape=jax.ShapeDtypeStruct((N_MELS, total_pad), jnp.float32),
        grid=grid,
        in_specs=[
            pl.BlockSpec((N_FFT, tile_f), lambda j: (0, j)),
            pl.BlockSpec((2 * NF_PAD, N_FFT), lambda j: (0, 0)),
            pl.BlockSpec((N_MELS, NF_PAD), lambda j: (0, 0)),
        ],
        out_specs=pl.BlockSpec((N_MELS, tile_f), lambda j: (0, j)),
        compiler_params=pltpu.CompilerParams(
            dimension_semantics=("parallel",),
            vmem_limit_bytes=32 * 1024 * 1024),
    )(frames_flat, w, fb_t)

    # un-flatten: (n_mels, B*n_frames) -> (B, n_mels, n_frames)
    out = out[:, :total].reshape(N_MELS, B, n_frames)
    return jnp.transpose(out, (1, 0, 2))


# ---------------- pure-JAX f32 reference (sanity check only) ----------------
def _ref_log_melspec(x):
    B, T = x.shape
    pad = N_FFT // 2
    x_pad = jnp.pad(x.astype(jnp.float32), ((0, 0), (pad, pad)), mode="reflect")
    n_frames = 1 + T // HOP
    idx = np.arange(n_frames)[:, None] * HOP + np.arange(N_FFT)[None, :]
    frames = x_pad[:, idx]                                            # (B, n_frames, n_fft)
    n = np.arange(N_FFT, dtype=np.float64)[:, None]
    k = np.arange(N_FREQS, dtype=np.float64)[None, :]
    window = 0.5 - 0.5 * np.cos(2.0 * np.pi * np.arange(N_FFT, dtype=np.float64) / N_FFT)
    ang = 2.0 * np.pi * n * k / N_FFT
    cos_mat = jnp.asarray((window[:, None] * np.cos(ang)).astype(np.float32))
    sin_mat = jnp.asarray((-window[:, None] * np.sin(ang)).astype(np.float32))
    fb = jnp.asarray(_mel_fbank(N_FREQS, F_MIN, F_MAX, N_MELS, SAMPLE_RATE))
    re = frames @ cos_mat
    im = frames @ sin_mat
    mag = jnp.sqrt(re * re + im * im)
    mel = mag @ fb
    out = jnp.log(jnp.maximum(mel, EPS))
    return jnp.transpose(out, (0, 2, 1))


if __name__ == "__main__":
    key = jax.random.PRNGKey(0)
    B, T = 2, 1024
    x = jax.random.normal(key, (B, T), dtype=jnp.float32)

    y = jax.block_until_ready(log_melspec(x))

    n_frames = 1 + T // HOP
    assert y.shape == (B, N_MELS, n_frames), y.shape
    assert bool(jnp.all(jnp.isfinite(y)))

    y_ref = jax.block_until_ready(_ref_log_melspec(x))
    # bf16 DFT + bf16 mel matmuls (both with f32 accumulation): ~0.5-1% relative
    # error on mel, which is ~0.01 absolute on the log output.
    assert np.allclose(np.asarray(y), np.asarray(y_ref), rtol=2e-2, atol=2.5e-2)

    print("KERNEL_OK")
</pallas_src>

<mosaic_0001>
module attributes {stable_mosaic.version = 11 : i64} {
  func.func @logmel_kernel(%arg0: i32, %arg1: memref<256x128xbf16, #tpu.memory_space<vmem>>, %arg2: memref<272x256xbf16, #tpu.memory_space<vmem>>, %arg3: memref<32x136xbf16, #tpu.memory_space<vmem>>, %arg4: memref<32x128xf32, #tpu.memory_space<vmem>>) attributes {dimension_semantics = [#tpu.dimension_semantics<parallel>], iteration_bounds = array<i64: 1>, scalar_prefetch = 0 : i64, scratch_operands = 0 : i64, tpu.core_type = #tpu.core_type<tc>, window_params = [{transform_indices = @transform_0, window_bounds = array<i64: 256, 128>}, {pipeline_mode = #tpu.pipeline_mode<synchronous>, transform_indices = @transform_1, window_bounds = array<i64: 272, 256>}, {pipeline_mode = #tpu.pipeline_mode<synchronous>, transform_indices = @transform_2, window_bounds = array<i64: 32, 136>}, {transform_indices = @transform_3, window_bounds = array<i64: 32, 128>}]} {
    %c0 = arith.constant 0 : index
    %c0_0 = arith.constant 0 : index
    %0 = vector.load %arg1[%c0, %c0_0] : memref<256x128xbf16, #tpu.memory_space<vmem>>, vector<256x128xbf16>
    %c0_1 = arith.constant 0 : index
    %c0_2 = arith.constant 0 : index
    %1 = vector.load %arg2[%c0_1, %c0_2] : memref<272x256xbf16, #tpu.memory_space<vmem>>, vector<272x256xbf16>
    %cst = arith.constant dense<0.000000e+00> : vector<272x128xf32>
    %2 = tpu.matmul %1, %0, %cst {dimension_numbers = #tpu.dot_dimension_numbers<[1], [0], [0], [1], [0, 0, 1, 1], [], []>} : vector<272x256xbf16>, vector<256x128xbf16>, vector<272x128xf32> -> vector<272x128xf32>
    %3 = vector.extract_strided_slice %2 {offsets = [0, 0], sizes = [136, 128], strides = [1, 1]} : vector<272x128xf32> to vector<136x128xf32>
    %4 = vector.extract_strided_slice %2 {offsets = [136, 0], sizes = [136, 128], strides = [1, 1]} : vector<272x128xf32> to vector<136x128xf32>
    %5 = arith.mulf %3, %3 : vector<136x128xf32>
    %6 = arith.mulf %4, %4 : vector<136x128xf32>
    %7 = arith.addf %5, %6 : vector<136x128xf32>
    %8 = math.sqrt %7 : vector<136x128xf32>
    %c0_3 = arith.constant 0 : index
    %c0_4 = arith.constant 0 : index
    %9 = vector.load %arg3[%c0_3, %c0_4] : memref<32x136xbf16, #tpu.memory_space<vmem>>, vector<32x136xbf16>
    %10 = arith.truncf %8 : vector<136x128xf32> to vector<136x128xbf16>
    %cst_5 = arith.constant dense<0.000000e+00> : vector<32x128xf32>
    %11 = tpu.matmul %9, %10, %cst_5 {dimension_numbers = #tpu.dot_dimension_numbers<[1], [0], [0], [1], [0, 0, 1, 1], [], []>} : vector<32x136xbf16>, vector<136x128xbf16>, vector<32x128xf32> -> vector<32x128xf32>
    %cst_6 = arith.constant 9.99999974E-6 : f32
    %12 = vector.broadcast %cst_6 : f32 to vector<32x128xf32>
    %13 = arith.maximumf %11, %12 : vector<32x128xf32>
    %14 = math.log %13 : vector<32x128xf32>
    %c0_7 = arith.constant 0 : index
    %c0_8 = arith.constant 0 : index
    %15 = vector.load %arg4[%c0_7, %c0_8] : memref<32x128xf32, #tpu.memory_space<vmem>>, vector<32x128xf32>
    tpu.vector_store %arg4[%c0_7, %c0_8], %14 {strides = array<i32>} : memref<32x128xf32, #tpu.memory_space<vmem>>, vector<32x128xf32>,
    return
  }
  func.func @transform_0(%arg0: i32) -> (i32, i32) {
    %c0_i32 = arith.constant 0 : i32
    %c0_i32_0 = arith.constant 0 : i32
    return %c0_i32, %arg0 : i32, i32
  }
  func.func @transform_1(%arg0: i32) -> (i32, i32) {
    %c0_i32 = arith.constant 0 : i32
    %c0_i32_0 = arith.constant 0 : i32
    %c0_i32_1 = arith.constant 0 : i32
    return %c0_i32, %c0_i32_0 : i32, i32
  }
  func.func @transform_2(%arg0: i32) -> (i32, i32) {
    %c0_i32 = arith.constant 0 : i32
    %c0_i32_0 = arith.constant 0 : i32
    %c0_i32_1 = arith.constant 0 : i32
    return %c0_i32, %c0_i32_0 : i32, i32
  }
  func.func @transform_3(%arg0: i32) -> (i32, i32) {
    %c0_i32 = arith.constant 0 : i32
    %c0_i32_0 = arith.constant 0 : i32
    return %c0_i32, %arg0 : i32, i32
  }
}

</mosaic_0001>

<llo_original>
// kernel: tpu_custom_call.1
$region0: #{tpu_custom_call.1}
  #allocation0 [shape = 'u32[]', space=smem, size = 0x4, offset = 0x4, fixed_abs, tag = 'smem constant byte address 0x4 - core index']
  #allocation1 [shape = 'u32[144,128]{1,0:T(1,128)}', space=vmem, size = 0x12000, scoped, tag = 'internal scratch']
  %s0 = inlined_call_operand.hbm [shape: bf16[256,128], index: 0, kind: input, shape index: {}]
  %s1 = inlined_call_operand.hbm [shape: bf16[272,256], index: 1, kind: input, shape index: {}]
  %s2 = inlined_call_operand.hbm [shape: bf16[32,136], index: 2, kind: input, shape index: {}]
  %s3 = inlined_call_operand.hbm [shape: f32[32,128], index: 3, kind: output, shape index: {}]
  %s4 = sld [smem:[#allocation0]]
  $region34: #{tpu_custom_call.1} parent=0
    _
  %s6 = ssub.s32 1, %s4
  %s7 = scalar_select 0, %s6, %s4
  $region1: #{tpu_custom_call.1} parent=0
    #allocation2 [shape = 'u8[65536]{0}', space=vmem, size = 0x10000, scoped, tag = 'input window, operand 0, single buffered']
    #allocation3 [shape = 's32[1]{0}', space=sflag, size = 0x4, scoped, tag = 'scoped memory for tpu_custom_call.1']
    #allocation4 [shape = 's32[1]{0}', space=sflag, size = 0x4, scoped, tag = 'scoped memory for tpu_custom_call.1']
    #allocation5 [shape = 'u8[139264]{0}', space=vmem, size = 0x22000, scoped, tag = 'input window, operand 1, single buffered']
    #allocation6 [shape = 's32[1]{0}', space=sflag, size = 0x4, scoped, tag = 'scoped memory for tpu_custom_call.1']
    #allocation7 [shape = 'u8[16384]{0}', space=vmem, size = 0x4000, scoped, tag = 'input window, operand 2, single buffered']
    #allocation8 [shape = 'u8[16384]{0}', space=vmem, size = 0x4000, scoped, tag = 'output window, operand 0, single buffered']
    %8 = vsyncpa [#allocation3], 0
    %9 = vsyncpa [#allocation6], 0
    %10 = vsyncpa [#allocation4], 0
    // Predicated region
    $region2: #{tpu_custom_call.1} parent=1 // pred_check
      _
    $region3: #{tpu_custom_call.1} parent=1 // pred_check_branch
      %12 = sbr.rel (0) target = $region5
    $region4: #{tpu_custom_call.1} parent=1 // pred_region
      %s14 = ssub.s32 2048, 2048
      %15 = vsyncadd [#allocation3], %s14
      %s16 = sshll.u32 [#allocation2], 4
      %s17 = int_to_ptr.vmem [resolvable:$true] %s16
      %22 = dma.hbm_to_vmem [thread:$0]  %s0, 2048, %s17, [#allocation3], 64, 64, 4
    $region5: #{tpu_custom_call.1} parent=1 // pred_fallthru
      _
    // Predicated region
    $region6: #{tpu_custom_call.1} parent=1 // pred_check
      _
    $region7: #{tpu_custom_call.1} parent=1 // pred_check_branch
      %24 = sbr.rel (0) target = $region9
    $region8: #{tpu_custom_call.1} parent=1 // pred_region
      %s26 = ssub.s32 4352, 4352
      %27 = vsyncadd [#allocation6], %s26
      %s28 = sshll.u32 [#allocation5], 4
      %s29 = int_to_ptr.vmem [resolvable:$true] %s28
      %34 = dma.hbm_to_vmem [thread:$0]  %s1, 4352, %s29, [#allocation6], 128, 128, 8
    $region9: #{tpu_custom_call.1} parent=1 // pred_fallthru
      _
    // Predicated region
    $region10: #{tpu_custom_call.1} parent=1 // pred_check
      _
    $region11: #{tpu_custom_call.1} parent=1 // pred_check_branch
      %36 = sbr.rel (0) target = $region13
    $region12: #{tpu_custom_call.1} parent=1 // pred_region
      %s38 = ssub.s32 512, 512
      %39 = vsyncadd [#allocation6], %s38
      %s40 = sshll.u32 [#allocation7], 4
      %s41 = int_to_ptr.vmem [resolvable:$true] %s40
      %46 = dma.hbm_to_vmem [thread:$0]  %s2, 512, %s41, [#allocation6], 128, 128, 8
    $region13: #{tpu_custom_call.1} parent=1 // pred_fallthru
      _
    // Predicated region
    $region14: #{tpu_custom_call.1} parent=1 // pred_check
      _
    $region15: #{tpu_custom_call.1} parent=1 // pred_check_branch
      %48 = sbr.rel (0) target = $region17
    $region16: #{tpu_custom_call.1} parent=1 // pred_region
      %49 = dma.done [#allocation3], 2048
    $region17: #{tpu_custom_call.1} parent=1 // pred_fallthru
      _
    // Predicated region
    $region18: #{tpu_custom_call.1} parent=1 // pred_check
      _
    $region19: #{tpu_custom_call.1} parent=1 // pred_check_branch
      %51 = sbr.rel (0) target = $region21
    $region20: #{tpu_custom_call.1} parent=1 // pred_region
      %52 = dma.done [#allocation6], 4352
    $region21: #{tpu_custom_call.1} parent=1 // pred_fallthru
      _
    // Predicated region
    $region22: #{tpu_custom_call.1} parent=1 // pred_check
      _
    $region23: #{tpu_custom_call.1} parent=1 // pred_check_branch
      %54 = sbr.rel (0) target = $region25
    $region24: #{tpu_custom_call.1} parent=1 // pred_region
      %55 = dma.done [#allocation6], 512
    $region25: #{tpu_custom_call.1} parent=1 // pred_fallthru
      _
    %v57 = vld [vmem:[#allocation2] sm:$0xf]
    %v58 = vld [vmem:[#allocation2 + $0x4] sm:$0xf]
    %v59 = vld [vmem:[#allocation2 + $0x8] sm:$0xf]
    %v60 = vld [vmem:[#allocation2 + $0xc] sm:$0xf]
    %v61 = vld [vmem:[#allocation2 + $0x10] sm:$0xf]
    %v62 = vld [vmem:[#allocation2 + $0x14] sm:$0xf]
    %v63 = vld [vmem:[#allocation2 + $0x18] sm:$0xf]
    %v64 = vld [vmem:[#allocation2 + $0x1c] sm:$0xf]
    %v65 = vld [vmem:[#allocation2 + $0x20] sm:$0xf]
    %v66 = vld [vmem:[#allocation2 + $0x24] sm:$0xf]
    %v67 = vld [vmem:[#allocation2 + $0x28] sm:$0xf]
    %v68 = vld [vmem:[#allocation2 + $0x2c] sm:$0xf]
    %v69 = vld [vmem:[#allocation2 + $0x30] sm:$0xf]
    %v70 = vld [vmem:[#allocation2 + $0x34] sm:$0xf]
    %v71 = vld [vmem:[#allocation2 + $0x38] sm:$0xf]
    %v72 = vld [vmem:[#allocation2 + $0x3c] sm:$0xf]
    %v73 = vld [vmem:[#allocation2 + $0x40] sm:$0xf]
    %v74 = vld [vmem:[#allocation2 + $0x44] sm:$0xf]
    %v75 = vld [vmem:[#allocation2 + $0x48] sm:$0xf]
    %v76 = vld [vmem:[#allocation2 + $0x4c] sm:$0xf]
    %v77 = vld [vmem:[#allocation2 + $0x50] sm:$0xf]
    %v78 = vld [vmem:[#allocation2 + $0x54] sm:$0xf]
    %v79 = vld [vmem:[#allocation2 + $0x58] sm:$0xf]
    %v80 = vld [vmem:[#allocation2 + $0x5c] sm:$0xf]
    %v81 = vld [vmem:[#allocation2 + $0x60] sm:$0xf]
    %v82 = vld [vmem:[#allocation2 + $0x64] sm:$0xf]
    %v83 = vld [vmem:[#allocation2 + $0x68] sm:$0xf]
    %v84 = vld [vmem:[#allocation2 + $0x6c] sm:$0xf]
    %v85 = vld [vmem:[#allocation2 + $0x70] sm:$0xf]
    %v86 = vld [vmem:[#allocation2 + $0x74] sm:$0xf]
    %v87 = vld [vmem:[#allocation2 + $0x78] sm:$0xf]
    %v88 = vld [vmem:[#allocation2 + $0x7c] sm:$0xf]
    %v89 = vld [vmem:[#allocation5] sm:$0xff]
    %v90 = vld [vmem:[#allocation5 + $0x8] sm:$0xff]
    %v91 = vld [vmem:[#allocation5 + $0x10] sm:$0xff]
    %v92 = vld [vmem:[#allocation5 + $0x18] sm:$0xff]
    %v93 = vld [vmem:[#allocation5 + $0x20] sm:$0xff]
    %v94 = vld [vmem:[#allocation5 + $0x28] sm:$0xff]
    %v95 = vld [vmem:[#allocation5 + $0x30] sm:$0xff]
    %v96 = vld [vmem:[#allocation5 + $0x38] sm:$0xff]
    %v97 = vld [vmem:[#allocation5 + $0x40] sm:$0xff]
    %v98 = vld [vmem:[#allocation5 + $0x48] sm:$0xff]
    %v99 = vld [vmem:[#allocation5 + $0x50] sm:$0xff]
    %v100 = vld [vmem:[#allocation5 + $0x58] sm:$0xff]
    %v101 = vld [vmem:[#allocation5 + $0x60] sm:$0xff]
    %v102 = vld [vmem:[#allocation5 + $0x68] sm:$0xff]
    %v103 = vld [vmem:[#allocation5 + $0x70] sm:$0xff]
    %v104 = vld [vmem:[#allocation5 + $0x78] sm:$0xff]
    %v105 = vld [vmem:[#allocation5 + $0x80] sm:$0xff]
    %v106 = vld [vmem:[#allocation5 + $0x88] sm:$0xff]
    %v107 = vld [vmem:[#allocation5 + $0x90] sm:$0xff]
    %v108 = vld [vmem:[#allocation5 + $0x98] sm:$0xff]
    %v109 = vld [vmem:[#allocation5 + $0xa0] sm:$0xff]
    %v110 = vld [vmem:[#allocation5 + $0xa8] sm:$0xff]
    %v111 = vld [vmem:[#allocation5 + $0xb0] sm:$0xff]
    %v112 = vld [vmem:[#allocation5 + $0xb8] sm:$0xff]
    %v113 = vld [vmem:[#allocation5 + $0xc0] sm:$0xff]
    %v114 = vld [vmem:[#allocation5 + $0xc8] sm:$0xff]
    %v115 = vld [vmem:[#allocation5 + $0xd0] sm:$0xff]
    %v116 = vld [vmem:[#allocation5 + $0xd8] sm:$0xff]
    %v117 = vld [vmem:[#allocation5 + $0xe0] sm:$0xff]
    %v118 = vld [vmem:[#allocation5 + $0xe8] sm:$0xff]
    %v119 = vld [vmem:[#allocation5 + $0xf0] sm:$0xff]
    %v120 = vld [vmem:[#allocation5 + $0xf8] sm:$0xff]
    %v121 = vld [vmem:[#allocation5 + $0x100] sm:$0xff]
    %v122 = vld [vmem:[#allocation5 + $0x108] sm:$0xff]
    %v157 = vunpack.c.l.b16 %v89
    %v158 = vunpack.c.h.b16 %v89
    %v159 = vunpack.c.l.b16 %v90
    %v160 = vunpack.c.h.b16 %v90
    %v161 = vunpack.c.l.b16 %v91
    %v162 = vunpack.c.h.b16 %v91
    %v163 = vunpack.c.l.b16 %v92
    %v164 = vunpack.c.h.b16 %v92
    %v165 = vunpack.c.l.b16 %v93
    %v166 = vunpack.c.h.b16 %v93
    %v167 = vunpack.c.l.b16 %v94
    %v168 = vunpack.c.h.b16 %v94
    %v169 = vunpack.c.l.b16 %v95
    %v170 = vunpack.c.h.b16 %v95
    %v171 = vunpack.c.l.b16 %v96
    %v172 = vunpack.c.h.b16 %v96
    %v173 = vunpack.c.l.b16 %v97
    %v174 = vunpack.c.h.b16 %v97
    %v175 = vunpack.c.l.b16 %v98
    %v176 = vunpack.c.h.b16 %v98
    %v177 = vunpack.c.l.b16 %v99
    %v178 = vunpack.c.h.b16 %v99
    %v179 = vunpack.c.l.b16 %v100
    %v180 = vunpack.c.h.b16 %v100
    %v181 = vunpack.c.l.b16 %v101
    %v182 = vunpack.c.h.b16 %v101
    %v183 = vunpack.c.l.b16 %v102
    %v184 = vunpack.c.h.b16 %v102
    %v185 = vunpack.c.l.b16 %v103
    %v186 = vunpack.c.h.b16 %v103
    %v187 = vunpack.c.l.b16 %v104
    %v188 = vunpack.c.h.b16 %v104
    %v189 = vunpack.c.l.b16 %v105
    %v190 = vunpack.c.h.b16 %v105
    %v191 = vunpack.c.l.b16 %v106
    %v192 = vunpack.c.h.b16 %v106
    %v193 = vunpack.c.l.b16 %v107
    %v194 = vunpack.c.h.b16 %v107
    %v195 = vunpack.c.l.b16 %v108
    %v196 = vunpack.c.h.b16 %v108
    %v197 = vunpack.c.l.b16 %v109
    %v198 = vunpack.c.h.b16 %v109
    %v199 = vunpack.c.l.b16 %v110
    %v200 = vunpack.c.h.b16 %v110
    %v201 = vunpack.c.l.b16 %v111
    %v202 = vunpack.c.h.b16 %v111
    %v203 = vunpack.c.l.b16 %v112
    %v204 = vunpack.c.h.b16 %v112
    %v205 = vunpack.c.l.b16 %v113
    %v206 = vunpack.c.h.b16 %v113
    %v207 = vunpack.c.l.b16 %v114
    %v208 = vunpack.c.h.b16 %v114
    %v209 = vunpack.c.l.b16 %v115
    %v210 = vunpack.c.h.b16 %v115
    %v211 = vunpack.c.l.b16 %v116
    %v212 = vunpack.c.h.b16 %v116
    %v213 = vunpack.c.l.b16 %v117
    %v214 = vunpack.c.h.b16 %v117
    %v215 = vunpack.c.l.b16 %v118
    %v216 = vunpack.c.h.b16 %v118
    %v217 = vunpack.c.l.b16 %v119
    %v218 = vunpack.c.h.b16 %v119
    %v219 = vunpack.c.l.b16 %v120
    %v220 = vunpack.c.h.b16 %v120
    %v221 = vunpack.c.l.b16 %v121
    %v222 = vunpack.c.h.b16 %v121
    %v223 = vunpack.c.l.b16 %v122
    %v224 = vunpack.c.h.b16 %v122
    %v225 = vpack.c.b16 %v159, %v157
    %v226 = vpack.c.b16 %v160, %v158
    %v227 = vpack.c.b16 %v163, %v161
    %v228 = vpack.c.b16 %v164, %v162
    %v229 = vpack.c.b16 %v167, %v165
    %v230 = vpack.c.b16 %v168, %v166
    %v231 = vpack.c.b16 %v171, %v169
    %v232 = vpack.c.b16 %v172, %v170
    %v233 = vpack.c.b16 %v175, %v173
    %v234 = vpack.c.b16 %v176, %v174
    %v235 = vpack.c.b16 %v179, %v177
    %v236 = vpack.c.b16 %v180, %v178
    %v237 = vpack.c.b16 %v183, %v181
    %v238 = vpack.c.b16 %v184, %v182
    %v239 = vpack.c.b16 %v187, %v185
    %v240 = vpack.c.b16 %v188, %v186
    %v241 = vpack.c.b16 %v191, %v189
    %v242 = vpack.c.b16 %v192, %v190
    %v243 = vpack.c.b16 %v195, %v193
    %v244 = vpack.c.b16 %v196, %v194
    %v245 = vpack.c.b16 %v199, %v197
    %v246 = vpack.c.b16 %v200, %v198
    %v247 = vpack.c.b16 %v203, %v201
    %v248 = vpack.c.b16 %v204, %v202
    %v249 = vpack.c.b16 %v207, %v205
    %v250 = vpack.c.b16 %v208, %v206
    %v251 = vpack.c.b16 %v211, %v209
    %v252 = vpack.c.b16 %v212, %v210
    %v253 = vpack.c.b16 %v215, %v213
    %v254 = vpack.c.b16 %v216, %v214
    %v255 = vpack.c.b16 %v219, %v217
    %v256 = vpack.c.b16 %v220, %v218
    %v257 = vpack.c.b16 %v223, %v221
    %v258 = vpack.c.b16 %v224, %v222
    %v325 = vunpack.c.l.b16 %v57
    %v326 = vunpack.c.l.b16 %v58
    %v327 = vunpack.c.l.b16 %v59
    %v328 = vunpack.c.l.b16 %v60
    %v329 = vunpack.c.l.b16 %v61
    %v330 = vunpack.c.l.b16 %v62
    %v331 = vunpack.c.l.b16 %v63
    %v332 = vunpack.c.l.b16 %v64
    %v333 = vunpack.c.l.b16 %v65
    %v334 = vunpack.c.l.b16 %v66
    %v335 = vunpack.c.l.b16 %v67
    %v336 = vunpack.c.l.b16 %v68
    %v337 = vunpack.c.l.b16 %v69
    %v338 = vunpack.c.l.b16 %v70
    %v339 = vunpack.c.l.b16 %v71
    %v340 = vunpack.c.l.b16 %v72
    %v341 = vunpack.c.l.b16 %v73
    %v342 = vunpack.c.l.b16 %v74
    %v343 = vunpack.c.l.b16 %v75
    %v344 = vunpack.c.l.b16 %v76
    %v345 = vunpack.c.l.b16 %v77
    %v346 = vunpack.c.l.b16 %v78
    %v347 = vunpack.c.l.b16 %v79
    %v348 = vunpack.c.l.b16 %v80
    %v349 = vunpack.c.l.b16 %v81
    %v350 = vunpack.c.l.b16 %v82
    %v351 = vunpack.c.l.b16 %v83
    %v352 = vunpack.c.l.b16 %v84
    %v353 = vunpack.c.l.b16 %v85
    %v354 = vunpack.c.l.b16 %v86
    %v355 = vunpack.c.l.b16 %v87
    %v356 = vunpack.c.l.b16 %v88
    %v357 = vpack.c.b16 %v326, %v325
    %v358 = vpack.c.b16 %v328, %v327
    %v359 = vpack.c.b16 %v330, %v329
    %v360 = vpack.c.b16 %v332, %v331
    %v361 = vpack.c.b16 %v334, %v333
    %v362 = vpack.c.b16 %v336, %v335
    %v363 = vpack.c.b16 %v338, %v337
    %v364 = vpack.c.b16 %v340, %v339
    %v365 = vpack.c.b16 %v342, %v341
    %v366 = vpack.c.b16 %v344, %v343
    %v367 = vpack.c.b16 %v346, %v345
    %v368 = vpack.c.b16 %v348, %v347
    %v369 = vpack.c.b16 %v350, %v349
    %v370 = vpack.c.b16 %v352, %v351
    %v371 = vpack.c.b16 %v354, %v353
    %v372 = vpack.c.b16 %v356, %v355
    %389 = vmatprep.subr.bf16.mxu0 0
    %390 = vmatpush1.bf16.msra.mxu0 %v357
    %391 = vmatprep.subr.bf16.mxu0 0
    %392 = vmatpush1.bf16.msra.mxu0 %v358
    %393 = vmatprep.subr.bf16.mxu0 0
    %394 = vmatpush1.bf16.msra.mxu0 %v359
    %395 = vmatprep.subr.bf16.mxu0 0
    %396 = vmatpush1.bf16.msra.mxu0 %v360
    %397 = vmatprep.subr.bf16.mxu0 0
    %398 = vmatpush1.bf16.msra.mxu0 %v361
    %399 = vmatprep.subr.bf16.mxu0 0
    %400 = vmatpush1.bf16.msra.mxu0 %v362
    %401 = vmatprep.subr.bf16.mxu0 0
    %402 = vmatpush1.bf16.msra.mxu0 %v363
    %403 = vmatprep.subr.bf16.mxu0 0
    %404 = vmatpush1.bf16.msra.mxu0 %v364
    %405 = vmatprep.subr.bf16.mxu0 0
    %406 = vmatpush1.bf16.msra.mxu0 %v365
    %407 = vmatprep.subr.bf16.mxu0 0
    %408 = vmatpush1.bf16.msra.mxu0 %v366
    %409 = vmatprep.subr.bf16.mxu0 0
    %410 = vmatpush1.bf16.msra.mxu0 %v367
    %411 = vmatprep.subr.bf16.mxu0 0
    %412 = vmatpush1.bf16.msra.mxu0 %v368
    %413 = vmatprep.subr.bf16.mxu0 0
    %414 = vmatpush1.bf16.msra.mxu0 %v369
    %415 = vmatprep.subr.bf16.mxu0 0
    %416 = vmatpush1.bf16.msra.mxu0 %v370
    %417 = vmatprep.subr.bf16.mxu0 0
    %418 = vmatpush1.bf16.msra.mxu0 %v371
    %419 = vmatprep.subr.bf16.mxu0 0
    %420 = vmatpush1.bf16.msra.mxu0 %v372
    %421 = vmatprep.mubr.bf16.mxu0 %v226
    %422 = vmatmul.mubr.bf16.gmra.mrb[0].mxu0 %v225
    %v423 = vpop.f32.mrb[0].mxu0
    %v424 = vadd.f32 0.0, %v423
    %v425 = vpop.f32.mrb[0].mxu0
    %v426 = vpop.f32.mrb[0].mxu0
    %v427 = vadd.f32 0.0, %v426
    %v428 = vpop.f32.mrb[0].mxu0
    %429 = vmatprep.mubr.bf16.mxu0 %v228
    %430 = vmatmul.mubr.bf16.gmra.mrb[0].mxu0 %v227
    %v431 = vpop.f32.mrb[0].mxu0
    %v432 = vadd.f32 0.0, %v431
    %v433 = vpop.f32.mrb[0].mxu0
    %v434 = vpop.f32.mrb[0].mxu0
    %v435 = vadd.f32 0.0, %v434
    %v436 = vpop.f32.mrb[0].mxu0
    %437 = vmatprep.mubr.bf16.mxu0 %v230
    %438 = vmatmul.mubr.bf16.gmra.mrb[0].mxu0 %v229
    %v439 = vpop.f32.mrb[0].mxu0
    %v440 = vadd.f32 0.0, %v439
    %v441 = vpop.f32.mrb[0].mxu0
    %v442 = vpop.f32.mrb[0].mxu0
    %v443 = vadd.f32 0.0, %v442
    %v444 = vpop.f32.mrb[0].mxu0
    %445 = vmatprep.mubr.bf16.mxu0 %v232
    %446 = vmatmul.mubr.bf16.gmra.mrb[0].mxu0 %v231
    %v447 = vpop.f32.mrb[0].mxu0
    %v448 = vadd.f32 0.0, %v447
    %v449 = vpop.f32.mrb[0].mxu0
    %v450 = vpop.f32.mrb[0].mxu0
    %v451 = vadd.f32 0.0, %v450
    %v452 = vpop.f32.mrb[0].mxu0
    %453 = vmatprep.mubr.bf16.mxu0 %v234
    %454 = vmatmul.mubr.bf16.gmra.mrb[0].mxu0 %v233
    %v455 = vpop.f32.mrb[0].mxu0
    %v456 = vadd.f32 0.0, %v455
    %v457 = vpop.f32.mrb[0].mxu0
    %v458 = vpop.f32.mrb[0].mxu0
    %v459 = vadd.f32 0.0, %v458
    %v460 = vpop.f32.mrb[0].mxu0
    %461 = vmatprep.mubr.bf16.mxu0 %v236
    %462 = vmatmul.mubr.bf16.gmra.mrb[0].mxu0 %v235
    %v463 = vpop.f32.mrb[0].mxu0
    %v464 = vadd.f32 0.0, %v463
    %v465 = vpop.f32.mrb[0].mxu0
    %v466 = vpop.f32.mrb[0].mxu0
    %v467 = vadd.f32 0.0, %v466
    %v468 = vpop.f32.mrb[0].mxu0
    %469 = vmatprep.mubr.bf16.mxu0 %v238
    %470 = vmatmul.mubr.bf16.gmra.mrb[0].mxu0 %v237
    %v471 = vpop.f32.mrb[0].mxu0
    %v472 = vadd.f32 0.0, %v471
    %v473 = vpop.f32.mrb[0].mxu0
    %v474 = vpop.f32.mrb[0].mxu0
    %v475 = vadd.f32 0.0, %v474
    %v476 = vpop.f32.mrb[0].mxu0
    %477 = vmatprep.mubr.bf16.mxu0 %v240
    %478 = vmatmul.mubr.bf16.gmra.mrb[0].mxu0 %v239
    %v479 = vpop.f32.mrb[0].mxu0
    %v480 = vadd.f32 0.0, %v479
    %v481 = vpop.f32.mrb[0].mxu0
    %v482 = vpop.f32.mrb[0].mxu0
    %v483 = vadd.f32 0.0, %v482
    %v484 = vpop.f32.mrb[0].mxu0
    %485 = vmatprep.mubr.bf16.mxu0 %v242
    %486 = vmatmul.mubr.bf16.gmra.mrb[0].mxu0 %v241
    %v487 = vpop.f32.mrb[0].mxu0
    %v488 = vadd.f32 0.0, %v487
    %v489 = vpop.f32.mrb[0].mxu0
    %v490 = vpop.f32.mrb[0].mxu0
    %v491 = vadd.f32 0.0, %v490
    %v492 = vpop.f32.mrb[0].mxu0
    %493 = vmatprep.mubr.bf16.mxu0 %v244
    %494 = vmatmul.mubr.bf16.gmra.mrb[0].mxu0 %v243
    %v495 = vpop.f32.mrb[0].mxu0
    %v496 = vadd.f32 0.0, %v495
    %v497 = vpop.f32.mrb[0].mxu0
    %v498 = vpop.f32.mrb[0].mxu0
    %v499 = vadd.f32 0.0, %v498
    %v500 = vpop.f32.mrb[0].mxu0
    %501 = vmatprep.mubr.bf16.mxu0 %v246
    %502 = vmatmul.mubr.bf16.gmra.mrb[0].mxu0 %v245
    %v503 = vpop.f32.mrb[0].mxu0
    %v504 = vadd.f32 0.0, %v503
    %v505 = vpop.f32.mrb[0].mxu0
    %v506 = vpop.f32.mrb[0].mxu0
    %v507 = vadd.f32 0.0, %v506
    %v508 = vpop.f32.mrb[0].mxu0
    %509 = vmatprep.mubr.bf16.mxu0 %v248
    %510 = vmatmul.mubr.bf16.gmra.mrb[0].mxu0 %v247
    %v511 = vpop.f32.mrb[0].mxu0
    %v512 = vadd.f32 0.0, %v511
    %v513 = vpop.f32.mrb[0].mxu0
    %v514 = vpop.f32.mrb[0].mxu0
    %v515 = vadd.f32 0.0, %v514
    %v516 = vpop.f32.mrb[0].mxu0
    %517 = vmatprep.mubr.bf16.mxu0 %v250
    %518 = vmatmul.mubr.bf16.gmra.mrb[0].mxu0 %v249
    %v519 = vpop.f32.mrb[0].mxu0
    %v520 = vadd.f32 0.0, %v519
    %v521 = vpop.f32.mrb[0].mxu0
    %v522 = vpop.f32.mrb[0].mxu0
    %v523 = vadd.f32 0.0, %v522
    %v524 = vpop.f32.mrb[0].mxu0
    %525 = vmatprep.mubr.bf16.mxu0 %v252
    %526 = vmatmul.mubr.bf16.gmra.mrb[0].mxu0 %v251
    %v527 = vpop.f32.mrb[0].mxu0
    %v528 = vadd.f32 0.0, %v527
    %v529 = vpop.f32.mrb[0].mxu0
    %v530 = vpop.f32.mrb[0].mxu0
    %v531 = vadd.f32 0.0, %v530
    %v532 = vpop.f32.mrb[0].mxu0
    %533 = vmatprep.mubr.bf16.mxu0 %v254
    %534 = vmatmul.mubr.bf16.gmra.mrb[0].mxu0 %v253
    %v535 = vpop.f32.mrb[0].mxu0
    %v536 = vadd.f32 0.0, %v535
    %v537 = vpop.f32.mrb[0].mxu0
    %v538 = vpop.f32.mrb[0].mxu0
    %v539 = vadd.f32 0.0, %v538
    %v540 = vpop.f32.mrb[0].mxu0
    %541 = vmatprep.mubr.bf16.mxu0 %v256
    %542 = vmatmul.mubr.bf16.gmra.mrb[0].mxu0 %v255
    %v543 = vpop.f32.mrb[0].mxu0
    %v544 = vadd.f32 0.0, %v543
    %v545 = vpop.f32.mrb[0].mxu0
    %v546 = vpop.f32.mrb[0].mxu0
    %v547 = vadd.f32 0.0, %v546
    %v548 = vpop.f32.mrb[0].mxu0
    %549 = vmatprep.mubr.bf16.mxu0 %v258
    %550 = vmatmul.mubr.bf16.gmra.mrb[0].mxu0 %v257
    %v551 = vpop.f32.mrb[0].mxu0
    %v552 = vadd.f32 0.0, %v551
    %v553 = vpop.f32.mrb[0].mxu0
    %v554 = vpop.f32.mrb[0].mxu0
    %v555 = vadd.f32 0.0, %v554
    %v556 = vpop.f32.mrb[0].mxu0
    %557 = vdwg.mxu0
    %v558 = vmul.f32 %v424, %v424
    %v559 = vmul.f32 %v427, %v427
    %v560 = vmul.f32 %v432, %v432
    %v561 = vmul.f32 %v435, %v435
    %v562 = vmul.f32 %v440, %v440
    %v563 = vmul.f32 %v443, %v443
    %v564 = vmul.f32 %v448, %v448
    %v565 = vmul.f32 %v451, %v451
    %v566 = vmul.f32 %v456, %v456
    %v567 = vmul.f32 %v459, %v459
    %v568 = vmul.f32 %v464, %v464
    %v569 = vmul.f32 %v467, %v467
    %v570 = vmul.f32 %v472, %v472
    %v571 = vmul.f32 %v475, %v475
    %v572 = vmul.f32 %v480, %v480
    %v573 = vmul.f32 %v483, %v483
    %v574 = vmul.f32 %v488, %v488
    %v575 = vmul.f32 %v491, %v491
    %v576 = vmul.f32 %v496, %v496
    %v577 = vmul.f32 %v499, %v499
    %v578 = vmul.f32 %v504, %v504
    %v579 = vmul.f32 %v507, %v507
    %v580 = vmul.f32 %v512, %v512
    %v581 = vmul.f32 %v515, %v515
    %v582 = vmul.f32 %v520, %v520
    %v583 = vmul.f32 %v523, %v523
    %v584 = vmul.f32 %v528, %v528
    %v585 = vmul.f32 %v531, %v531
    %v586 = vmul.f32 %v536, %v536
    %v587 = vmul.f32 %v539, %v539
    %v588 = vmul.f32 %v544, %v544
    %v589 = vmul.f32 %v547, %v547
    %v590 = vmul.f32 %v552, %v552
    %v591 = vmul.f32 %v555, %v555
    %v592 = vadd.f32 %v558, %v575
    %v593 = vadd.f32 %v559, %v576
    %v594 = vadd.f32 %v560, %v577
    %v595 = vadd.f32 %v561, %v578
    %v596 = vadd.f32 %v562, %v579
    %v597 = vadd.f32 %v563, %v580
    %v598 = vadd.f32 %v564, %v581
    %v599 = vadd.f32 %v565, %v582
    %v600 = vadd.f32 %v566, %v583
    %v601 = vadd.f32 %v567, %v584
    %v602 = vadd.f32 %v568, %v585
    %v603 = vadd.f32 %v569, %v586
    %v604 = vadd.f32 %v570, %v587
    %v605 = vadd.f32 %v571, %v588
    %v606 = vadd.f32 %v572, %v589
    %v607 = vadd.f32 %v573, %v590
    %v608 = vadd.f32 %v574, %v591
    %v609 = vrsqrt.pop %v592
    %v610 = vmul.f32 %v592, %v609
    %vm611 = vcmp.eq.f32.partialorder %v592, inf
    %v612 = vsel %vm611, %v592, %v610
    %vm613 = vcmp.eq.f32.partialorder %v592, 0.0
    %v614 = vand.u32 %v592, 2147483648
    %v615 = vsel %vm613, %v614, %v612
    %v616 = vrsqrt.pop %v593
    %v617 = vmul.f32 %v593, %v616
    %vm618 = vcmp.eq.f32.partialorder %v593, inf
    %v619 = vsel %vm618, %v593, %v617
    %vm620 = vcmp.eq.f32.partialorder %v593, 0.0
    %v621 = vand.u32 %v593, 2147483648
    %v622 = vsel %vm620, %v621, %v619
    %v623 = vrsqrt.pop %v594
    %v624 = vmul.f32 %v594, %v623
    %vm625 = vcmp.eq.f32.partialorder %v594, inf
    %v626 = vsel %vm625, %v594, %v624
    %vm627 = vcmp.eq.f32.partialorder %v594, 0.0
    %v628 = vand.u32 %v594, 2147483648
    %v629 = vsel %vm627, %v628, %v626
    %v630 = vrsqrt.pop %v595
    %v631 = vmul.f32 %v595, %v630
    %vm632 = vcmp.eq.f32.partialorder %v595, inf
    %v633 = vsel %vm632, %v595, %v631
    %vm634 = vcmp.eq.f32.partialorder %v595, 0.0
    %v635 = vand.u32 %v595, 2147483648
    %v636 = vsel %vm634, %v635, %v633
    %v637 = vrsqrt.pop %v596
    %v638 = vmul.f32 %v596, %v637
    %vm639 = vcmp.eq.f32.partialorder %v596, inf
    %v640 = vsel %vm639, %v596, %v638
    %vm641 = vcmp.eq.f32.partialorder %v596, 0.0
    %v642 = vand.u32 %v596, 2147483648
    %v643 = vsel %vm641, %v642, %v640
    %v644 = vrsqrt.pop %v597
    %v645 = vmul.f32 %v597, %v644
    %vm646 = vcmp.eq.f32.partialorder %v597, inf
    %v647 = vsel %vm646, %v597, %v645
    %vm648 = vcmp.eq.f32.partialorder %v597, 0.0
    %v649 = vand.u32 %v597, 2147483648
    %v650 = vsel %vm648, %v649, %v647
    %v651 = vrsqrt.pop %v598
    %v652 = vmul.f32 %v598, %v651
    %vm653 = vcmp.eq.f32.partialorder %v598, inf
    %v654 = vsel %vm653, %v598, %v652
    %vm655 = vcmp.eq.f32.partialorder %v598, 0.0
    %v656 = vand.u32 %v598, 2147483648
    %v657 = vsel %vm655, %v656, %v654
    %v658 = vrsqrt.pop %v599
    %v659 = vmul.f32 %v599, %v658
    %vm660 = vcmp.eq.f32.partialorder %v599, inf
    %v661 = vsel %vm660, %v599, %v659
    %vm662 = vcmp.eq.f32.partialorder %v599, 0.0
    %v663 = vand.u32 %v599, 2147483648
    %v664 = vsel %vm662, %v663, %v661
    %v665 = vrsqrt.pop %v600
    %v666 = vmul.f32 %v600, %v665
    %vm667 = vcmp.eq.f32.partialorder %v600, inf
    %v668 = vsel %vm667, %v600, %v666
    %vm669 = vcmp.eq.f32.partialorder %v600, 0.0
    %v670 = vand.u32 %v600, 2147483648
    %v671 = vsel %vm669, %v670, %v668
    %v672 = vrsqrt.pop %v601
    %v673 = vmul.f32 %v601, %v672
    %vm674 = vcmp.eq.f32.partialorder %v601, inf
    %v675 = vsel %vm674, %v601, %v673
    %vm676 = vcmp.eq.f32.partialorder %v601, 0.0
    %v677 = vand.u32 %v601, 2147483648
    %v678 = vsel %vm676, %v677, %v675
    %v679 = vrsqrt.pop %v602
    %v680 = vmul.f32 %v602, %v679
    %vm681 = vcmp.eq.f32.partialorder %v602, inf
    %v682 = vsel %vm681, %v602, %v680
    %vm683 = vcmp.eq.f32.partialorder %v602, 0.0
    %v684 = vand.u32 %v602, 2147483648
    %v685 = vsel %vm683, %v684, %v682
    %v686 = vrsqrt.pop %v603
    %v687 = vmul.f32 %v603, %v686
    %vm688 = vcmp.eq.f32.partialorder %v603, inf
    %v689 = vsel %vm688, %v603, %v687
    %vm690 = vcmp.eq.f32.partialorder %v603, 0.0
    %v691 = vand.u32 %v603, 2147483648
    %v692 = vsel %vm690, %v691, %v689
    %v693 = vrsqrt.pop %v604
    %v694 = vmul.f32 %v604, %v693
    %vm695 = vcmp.eq.f32.partialorder %v604, inf
    %v696 = vsel %vm695, %v604, %v694
    %vm697 = vcmp.eq.f32.partialorder %v604, 0.0
    %v698 = vand.u32 %v604, 2147483648
    %v699 = vsel %vm697, %v698, %v696
    %v700 = vrsqrt.pop %v605
    %v701 = vmul.f32 %v605, %v700
    %vm702 = vcmp.eq.f32.partialorder %v605, inf
    %v703 = vsel %vm702, %v605, %v701
    %vm704 = vcmp.eq.f32.partialorder %v605, 0.0
    %v705 = vand.u32 %v605, 2147483648
    %v706 = vsel %vm704, %v705, %v703
    %v707 = vrsqrt.pop %v606
    %v708 = vmul.f32 %v606, %v707
    %vm709 = vcmp.eq.f32.partialorder %v606, inf
    %v710 = vsel %vm709, %v606, %v708
    %vm711 = vcmp.eq.f32.partialorder %v606, 0.0
    %v712 = vand.u32 %v606, 2147483648
    %v713 = vsel %vm711, %v712, %v710
    %v714 = vrsqrt.pop %v607
    %v715 = vmul.f32 %v607, %v714
    %vm716 = vcmp.eq.f32.partialorder %v607, inf
    %v717 = vsel %vm716, %v607, %v715
    %vm718 = vcmp.eq.f32.partialorder %v607, 0.0
    %v719 = vand.u32 %v607, 2147483648
    %v720 = vsel %vm718, %v719, %v717
    %v721 = vrsqrt.pop %v608
    %v722 = vmul.f32 %v608, %v721
    %vm723 = vcmp.eq.f32.partialorder %v608, inf
    %v724 = vsel %vm723, %v608, %v722
    %vm725 = vcmp.eq.f32.partialorder %v608, 0.0
    %v726 = vand.u32 %v608, 2147483648
    %v727 = vsel %vm725, %v726, %v724
    %v728 = vld [vmem:[#allocation7] sm:$0xff]
    %v729 = vld [vmem:[#allocation7 + $0x8] sm:$0xff]
    %v730 = vld [vmem:[#allocation7 + $0x10] sm:$0xff]
    %v731 = vld [vmem:[#allocation7 + $0x18] sm:$0xff]
    %v732 = vpack.c.bf16 %v622, %v615
    %v733 = vpack.c.bf16 %v636, %v629
    %v734 = vpack.c.bf16 %v650, %v643
    %v735 = vpack.c.bf16 %v664, %v657
    %v736 = vpack.c.bf16 %v678, %v671
    %v737 = vpack.c.bf16 %v692, %v685
    %v738 = vpack.c.bf16 %v706, %v699
    %v739 = vpack.c.bf16 %v720, %v713
    %v740 = vpack.c.bf16 %v727, %v727
    %v745 = vunpack.c.l.b16 %v728
    %v746 = vunpack.c.h.b16 %v728
    %v747 = vunpack.c.l.b16 %v729
    %v748 = vunpack.c.h.b16 %v729
    %v749 = vunpack.c.l.b16 %v730
    %v750 = vunpack.c.h.b16 %v730
    %v751 = vunpack.c.l.b16 %v731
    %v752 = vunpack.c.h.b16 %v731
    %v753 = vpack.c.b16 %v747, %v745
    %v754 = vpack.c.b16 %v748, %v746
    %v755 = vpack.c.b16 %v751, %v749
    %v756 = vpack.c.b16 %v752, %v750
    %vm759 = vcmask 64512
    %v761 = vsel %vm759, %v754, 0
    %v764 = vsel %vm759, %v756, 0
    %vm766 = vcmask 1043456
    %v768 = vsel %vm766, %v740, 0
    %770 = vmatprep.subr.bf16.mxu0 0
    %771 = vmatpush1.bf16.msra.mxu0 %v732
    %772 = vmatprep.subr.bf16.mxu0 0
    %773 = vmatpush1.bf16.msra.mxu0 %v733
    %774 = vmatprep.subr.bf16.mxu0 0
    %775 = vmatpush1.bf16.msra.mxu0 %v734
    %776 = vmatprep.subr.bf16.mxu0 0
    %777 = vmatpush1.bf16.msra.mxu0 %v735
    %778 = vmatprep.subr.bf16.mxu0 0
    %779 = vmatpush1.bf16.msra.mxu0 %v736
    %780 = vmatprep.subr.bf16.mxu0 0
    %781 = vmatpush1.bf16.msra.mxu0 %v737
    %782 = vmatprep.subr.bf16.mxu0 0
    %783 = vmatpush1.bf16.msra.mxu0 %v738
    %784 = vmatprep.subr.bf16.mxu0 0
    %785 = vmatpush1.bf16.msra.mxu0 %v739
    %786 = vmatprep.subr.bf16.mxu0 0
    %787 = vmatpush1.bf16.msra.mxu0 %v768
    %788 = vmatprep.subr.bf16.mxu0 0
    %789 = vmatpush1.bf16.msra.mxu0 0
    %790 = vmatprep.subr.bf16.mxu0 0
    %791 = vmatpush1.bf16.msra.mxu0 0
    %792 = vmatprep.subr.bf16.mxu0 0
    %793 = vmatpush1.bf16.msra.mxu0 0
    %794 = vmatprep.subr.bf16.mxu0 0
    %795 = vmatpush1.bf16.msra.mxu0 0
    %796 = vmatprep.subr.bf16.mxu0 0
    %797 = vmatpush1.bf16.msra.mxu0 0
    %798 = vmatprep.subr.bf16.mxu0 0
    %799 = vmatpush1.bf16.msra.mxu0 0
    %800 = vmatprep.subr.bf16.mxu0 0
    %801 = vmatpush1.bf16.msra.mxu0 0
    %802 = vmatprep.mubr.bf16.mxu0 %v761
    %803 = vmatmul.mubr.bf16.gmra.mrb[0].mxu0 %v753
    %v804 = vpop.f32.mrb[0].mxu0
    %v805 = vadd.f32 0.0, %v804
    %v806 = vpop.f32.mrb[0].mxu0
    %v807 = vpop.f32.mrb[0].mxu0
    %v808 = vadd.f32 0.0, %v807
    %v809 = vpop.f32.mrb[0].mxu0
    %810 = vmatprep.mubr.bf16.mxu0 %v764
    %811 = vmatmul.mubr.bf16.gmra.mrb[0].mxu0 %v755
    %v812 = vpop.f32.mrb[0].mxu0
    %v813 = vadd.f32 0.0, %v812
    %v814 = vpop.f32.mrb[0].mxu0
    %v815 = vpop.f32.mrb[0].mxu0
    %v816 = vadd.f32 0.0, %v815
    %v817 = vpop.f32.mrb[0].mxu0
    %818 = vdwg.mxu0
    %v819 = vmax.f32 %v805, 1e-05
    %v820 = vmax.f32 %v808, 1e-05
    %v821 = vmax.f32 %v813, 1e-05
    %v822 = vmax.f32 %v816, 1e-05
    %v823 = vlog2.pop %v819
    %v824 = vmul.f32 %v823, 0.6931472
    %v825 = vlog2.pop %v820
    %v826 = vmul.f32 %v825, 0.6931472
    %v827 = vlog2.pop %v821
    %v828 = vmul.f32 %v827, 0.6931472
    %v829 = vlog2.pop %v822
    %v830 = vmul.f32 %v829, 0.6931472
    %831 = vst [vmem:[#allocation8] sm:$0xff] %v824
    %832 = vst [vmem:[#allocation8 + $0x8] sm:$0xff] %v826
    %833 = vst [vmem:[#allocation8 + $0x10] sm:$0xff] %v828
    %834 = vst [vmem:[#allocation8 + $0x18] sm:$0xff] %v830
    // Predicated region
    $region26: #{tpu_custom_call.1} parent=1 // pred_check
      _
    $region27: #{tpu_custom_call.1} parent=1 // pred_check_branch
      %836 = sbr.rel (0) target = $region29
    $region28: #{tpu_custom_call.1} parent=1 // pred_region
      %s838 = ssub.s32 512, 512
      %839 = vsyncadd [#allocation4], %s838
      %s840 = sshll.u32 [#allocation8], 4
      %s841 = int_to_ptr.vmem [resolvable:$true] %s840
      %846 = dma.vmem_to_hbm [thread:$0]  %s841, 512, %s3, [#allocation4], 128, 128, 8
    $region29: #{tpu_custom_call.1} parent=1 // pred_fallthru
      _
    // Predicated region
    $region30: #{tpu_custom_call.1} parent=1 // pred_check
      _
    $region31: #{tpu_custom_call.1} parent=1 // pred_check_branch
      %848 = sbr.rel (0) target = $region33
    $region32: #{tpu_custom_call.1} parent=1 // pred_region
      %849 = dma.done [#allocation4], 512
    $region33: #{tpu_custom_call.1} parent=1 // pred_fallthru
      _
    %850 = vsyncpa [#allocation3], 1
    %851 = vsyncpa [#allocation6], 1
    %852 = vsyncpa [#allocation4], 1

</llo_original>
